<compile_context>
chip_gen: v5e
topology: v5e:2x2
jax: 0.10.0
libtpu: 0.0.40
codegen_flags: <defaults>
</compile_context>

<pallas_src>
import functools

import jax
import jax.numpy as jnp
from jax.experimental import pallas as pl
from jax.experimental.pallas import tpu as pltpu


def _round_up(x, m):
    return (x + m - 1) // m * m


def _target_model_kernel(x_ref,
                         w1_ref, b1_ref,
                         w2_ref, b2_ref,
                         w3_ref, b3_ref,
                         w4_ref, b4_ref,
                         out_ref):
    """Fused encoder.encode + source_predictor.predictor forward.

    x_ref:      (TM, F_pad)    bf16  -- one batch tile (advances with grid)
    w*_ref:     (K_pad, N_pad) bf16  -- resident weights
    b*_ref:     (1, N_pad)     f32   -- resident biases
    out_ref:    (TM, O_pad)    f32   -- one output tile

    Matmuls hit the MXU in bf16 with f32 accumulation; ReLU runs on the VPU in
    f32; sigmoid exp/recip go to the EUP.
    """
    x = x_ref[...]                                                    # bf16

    # ---- target_encoder.encode(X_target) ----
    h = jnp.dot(x, w1_ref[...], preferred_element_type=jnp.float32) + b1_ref[...]
    h = jnp.maximum(h, 0.0).astype(jnp.bfloat16)                      # ReLU
    z = jnp.dot(h, w2_ref[...], preferred_element_type=jnp.float32) + b2_ref[...]
    z = jnp.maximum(z, 0.0).astype(jnp.bfloat16)                      # ReLU (latent)

    # ---- source_predcitor.predictor(x_tar) ----
    p = jnp.dot(z, w3_ref[...], preferred_element_type=jnp.float32) + b3_ref[...]
    p = jnp.maximum(p, 0.0).astype(jnp.bfloat16)                      # ReLU
    logits = jnp.dot(p, w4_ref[...], preferred_element_type=jnp.float32) + b4_ref[...]

    # Sigmoid output head (drug-response probability); EUP exp + reciprocal.
    out_ref[...] = jax.nn.sigmoid(logits).astype(out_ref.dtype)


@functools.partial(jax.jit, static_argnames=("tm",))
def target_model_forward(x, params, *, tm=512):
    """Pads operands to TPU-friendly shapes and calls the fused kernel.

    - batch padded to a multiple of TM (TM itself a multiple of 8),
    - every feature/hidden/output dim zero-padded to a multiple of 128,
    - X / weights cast to bf16, biases kept f32,
    - weights resident across the batch grid, X/out tiled & pipelined.
    """
    (w1, b1), (w2, b2), (w3, b3), (w4, b4) = params
    B, F = x.shape
    H1 = w1.shape[1]
    Z = w2.shape[1]
    H2 = w3.shape[1]
    O = w4.shape[1]

    # ---- padding plan ------------------------------------------------------
    TM = tm if B >= tm else _round_up(B, 8)
    B_pad = _round_up(B, TM)
    F_pad = _round_up(F, 128)
    H1_pad = _round_up(H1, 128)
    Z_pad = _round_up(Z, 128)
    H2_pad = _round_up(H2, 128)
    O_pad = _round_up(O, 128)

    def pad2(a, r, c, dtype):
        out = jnp.zeros((r, c), dtype)
        return out.at[:a.shape[0], :a.shape[1]].set(a.astype(dtype))

    x_p = pad2(x, B_pad, F_pad, jnp.bfloat16)
    w1_p = pad2(w1, F_pad, H1_pad, jnp.bfloat16)
    w2_p = pad2(w2, H1_pad, Z_pad, jnp.bfloat16)
    w3_p = pad2(w3, Z_pad, H2_pad, jnp.bfloat16)
    w4_p = pad2(w4, H2_pad, O_pad, jnp.bfloat16)
    b1_p = pad2(b1, 1, H1_pad, jnp.float32)
    b2_p = pad2(b2, 1, Z_pad, jnp.float32)
    b3_p = pad2(b3, 1, H2_pad, jnp.float32)
    b4_p = pad2(b4, 1, O_pad, jnp.float32)

    grid = (B_pad // TM,)

    # X / output advance with the batch grid; weights & biases are resident.
    x_spec = pl.BlockSpec((TM, F_pad), lambda i: (i, 0))
    out_spec = pl.BlockSpec((TM, O_pad), lambda i: (i, 0))
    resident = lambda a: pl.BlockSpec(a.shape, lambda i: (0, 0))

    # ---- VMEM budget / cost estimate --------------------------------------
    # Count every input as double-buffered (Pallas allocates 2 buffers per
    # input block even when the index_map is constant), plus f32/bf16 temps.
    weight_bytes = sum(w.size * 2 for w in (w1_p, w2_p, w3_p, w4_p))
    bias_bytes = sum(b.size * 4 for b in (b1_p, b2_p, b3_p, b4_p))
    act_bytes = TM * (H1_pad + Z_pad + H2_pad) * (4 + 2)          # f32 + bf16 temps
    stream_bytes = 2 * TM * F_pad * 2 + 2 * TM * O_pad * 4        # double-buffered x/out
    vmem_limit = min(64 * 1024 * 1024,
                     max(int(1.25 * (2 * (weight_bytes + bias_bytes)
                                     + act_bytes + stream_bytes)),
                         4 * 1024 * 1024))

    flops = 2 * B_pad * (F_pad * H1_pad + H1_pad * Z_pad
                         + Z_pad * H2_pad + H2_pad * O_pad)
    bytes_accessed = (x_p.size * 2 + weight_bytes + bias_bytes
                      + B_pad * O_pad * 4)
    cost = pl.CostEstimate(flops=flops,
                           transcendentals=B_pad * O_pad,
                           bytes_accessed=bytes_accessed)

    out_pad = pl.pallas_call(
        _target_model_kernel,
        out_shape=jax.ShapeDtypeStruct((B_pad, O_pad), jnp.float32),
        grid=grid,
        in_specs=[x_spec,
                  resident(w1_p), resident(b1_p),
                  resident(w2_p), resident(b2_p),
                  resident(w3_p), resident(b3_p),
                  resident(w4_p), resident(b4_p)],
        out_specs=out_spec,
        compiler_params=pltpu.CompilerParams(
            dimension_semantics=("parallel",),
            vmem_limit_bytes=vmem_limit),
        cost_estimate=cost,
    )(x_p, w1_p, b1_p, w2_p, b2_p, w3_p, b3_p, w4_p, b4_p)

    return out_pad[:B, :O]


def init_params(key, f_in, h_enc, z_dim, h_pred, n_out):
    """Deterministic synthetic weights (PyTorch Linear-style uniform init)."""
    def linear(k, fan_in, fan_out):
        k_w, k_b = jax.random.split(k)
        bound = 1.0 / jnp.sqrt(fan_in)
        w = jax.random.uniform(k_w, (fan_in, fan_out), jnp.float32, -bound, bound)
        b = jax.random.uniform(k_b, (1, fan_out), jnp.float32, -bound, bound)
        return w, b

    k1, k2, k3, k4 = jax.random.split(key, 4)
    return (linear(k1, f_in, h_enc),    # encoder layer 1
            linear(k2, h_enc, z_dim),   # encoder layer 2 (latent)
            linear(k3, z_dim, h_pred),  # predictor layer 1
            linear(k4, h_pred, n_out))  # predictor output head


if __name__ == "__main__":
    # Small shapes consistent with the forward: batch of cells x gene features.
    B, F_IN, H_ENC, Z_DIM, H_PRED, N_OUT = 8, 64, 32, 16, 32, 2

    key = jax.random.PRNGKey(0)
    k_x, k_p = jax.random.split(key)
    X_target = jax.random.normal(k_x, (B, F_IN), jnp.float32)
    params = init_params(k_p, F_IN, H_ENC, Z_DIM, H_PRED, N_OUT)

    y_src = target_model_forward(X_target, params)
    jax.block_until_ready(y_src)

    # Reference check in plain JAX / f32 (same math).  Tolerance is loose
    # because the kernel path runs the matmuls in bf16 (f32 accumulation).
    (w1, b1), (w2, b2), (w3, b3), (w4, b4) = params
    h = jnp.maximum(X_target @ w1 + b1, 0.0)
    x_tar = jnp.maximum(h @ w2 + b2, 0.0)
    p = jnp.maximum(x_tar @ w3 + b3, 0.0)
    ref = jax.nn.sigmoid(p @ w4 + b4)

    assert y_src.shape == (B, N_OUT)
    assert jnp.allclose(y_src, ref, atol=3e-2, rtol=0.0), (
        float(jnp.max(jnp.abs(y_src - ref))))

    print("KERNEL_OK")
</pallas_src>

<mosaic_0001>
module attributes {stable_mosaic.version = 11 : i64} {
  func.func @_target_model_kernel(%arg0: i32, %arg1: memref<8x128xbf16, #tpu.memory_space<vmem>>, %arg2: memref<128x128xbf16, #tpu.memory_space<vmem>>, %arg3: memref<1x128xf32, #tpu.memory_space<vmem>>, %arg4: memref<128x128xbf16, #tpu.memory_space<vmem>>, %arg5: memref<1x128xf32, #tpu.memory_space<vmem>>, %arg6: memref<128x128xbf16, #tpu.memory_space<vmem>>, %arg7: memref<1x128xf32, #tpu.memory_space<vmem>>, %arg8: memref<128x128xbf16, #tpu.memory_space<vmem>>, %arg9: memref<1x128xf32, #tpu.memory_space<vmem>>, %arg10: memref<8x128xf32, #tpu.memory_space<vmem>>) attributes {dimension_semantics = [#tpu.dimension_semantics<parallel>], iteration_bounds = array<i64: 1>, scalar_prefetch = 0 : i64, scratch_operands = 0 : i64, tpu.core_type = #tpu.core_type<tc>, window_params = [{transform_indices = @transform_0, window_bounds = array<i64: 8, 128>}, {pipeline_mode = #tpu.pipeline_mode<synchronous>, transform_indices = @transform_1, window_bounds = array<i64: 128, 128>}, {pipeline_mode = #tpu.pipeline_mode<synchronous>, transform_indices = @transform_2, window_bounds = array<i64: 1, 128>}, {pipeline_mode = #tpu.pipeline_mode<synchronous>, transform_indices = @transform_3, window_bounds = array<i64: 128, 128>}, {pipeline_mode = #tpu.pipeline_mode<synchronous>, transform_indices = @transform_4, window_bounds = array<i64: 1, 128>}, {pipeline_mode = #tpu.pipeline_mode<synchronous>, transform_indices = @transform_5, window_bounds = array<i64: 128, 128>}, {pipeline_mode = #tpu.pipeline_mode<synchronous>, transform_indices = @transform_6, window_bounds = array<i64: 1, 128>}, {pipeline_mode = #tpu.pipeline_mode<synchronous>, transform_indices = @transform_7, window_bounds = array<i64: 128, 128>}, {pipeline_mode = #tpu.pipeline_mode<synchronous>, transform_indices = @transform_8, window_bounds = array<i64: 1, 128>}, {transform_indices = @transform_9, window_bounds = array<i64: 8, 128>}]} {
    %c0 = arith.constant 0 : index
    %c0_0 = arith.constant 0 : index
    %0 = vector.load %arg1[%c0, %c0_0] : memref<8x128xbf16, #tpu.memory_space<vmem>>, vector<8x128xbf16>
    %c0_1 = arith.constant 0 : index
    %c0_2 = arith.constant 0 : index
    %1 = vector.load %arg2[%c0_1, %c0_2] : memref<128x128xbf16, #tpu.memory_space<vmem>>, vector<128x128xbf16>
    %cst = arith.constant dense<0.000000e+00> : vector<8x128xf32>
    %2 = tpu.matmul %0, %1, %cst {dimension_numbers = #tpu.dot_dimension_numbers<[1], [0], [0], [1], [0, 0, 1, 1], [], []>} : vector<8x128xbf16>, vector<128x128xbf16>, vector<8x128xf32> -> vector<8x128xf32>
    %c0_3 = arith.constant 0 : index
    %c0_4 = arith.constant 0 : index
    %3 = vector.load %arg3[%c0_3, %c0_4] : memref<1x128xf32, #tpu.memory_space<vmem>>, vector<1x128xf32>
    %4 = vector.broadcast %3 : vector<1x128xf32> to vector<8x128xf32>
    %5 = arith.addf %2, %4 : vector<8x128xf32>
    %cst_5 = arith.constant 0.000000e+00 : f32
    %6 = vector.broadcast %cst_5 : f32 to vector<8x128xf32>
    %7 = arith.maximumf %5, %6 : vector<8x128xf32>
    %8 = arith.truncf %7 : vector<8x128xf32> to vector<8x128xbf16>
    %c0_6 = arith.constant 0 : index
    %c0_7 = arith.constant 0 : index
    %9 = vector.load %arg4[%c0_6, %c0_7] : memref<128x128xbf16, #tpu.memory_space<vmem>>, vector<128x128xbf16>
    %cst_8 = arith.constant dense<0.000000e+00> : vector<8x128xf32>
    %10 = tpu.matmul %8, %9, %cst_8 {dimension_numbers = #tpu.dot_dimension_numbers<[1], [0], [0], [1], [0, 0, 1, 1], [], []>} : vector<8x128xbf16>, vector<128x128xbf16>, vector<8x128xf32> -> vector<8x128xf32>
    %c0_9 = arith.constant 0 : index
    %c0_10 = arith.constant 0 : index
    %11 = vector.load %arg5[%c0_9, %c0_10] : memref<1x128xf32, #tpu.memory_space<vmem>>, vector<1x128xf32>
    %12 = vector.broadcast %11 : vector<1x128xf32> to vector<8x128xf32>
    %13 = arith.addf %10, %12 : vector<8x128xf32>
    %cst_11 = arith.constant 0.000000e+00 : f32
    %14 = vector.broadcast %cst_11 : f32 to vector<8x128xf32>
    %15 = arith.maximumf %13, %14 : vector<8x128xf32>
    %16 = arith.truncf %15 : vector<8x128xf32> to vector<8x128xbf16>
    %c0_12 = arith.constant 0 : index
    %c0_13 = arith.constant 0 : index
    %17 = vector.load %arg6[%c0_12, %c0_13] : memref<128x128xbf16, #tpu.memory_space<vmem>>, vector<128x128xbf16>
    %cst_14 = arith.constant dense<0.000000e+00> : vector<8x128xf32>
    %18 = tpu.matmul %16, %17, %cst_14 {dimension_numbers = #tpu.dot_dimension_numbers<[1], [0], [0], [1], [0, 0, 1, 1], [], []>} : vector<8x128xbf16>, vector<128x128xbf16>, vector<8x128xf32> -> vector<8x128xf32>
    %c0_15 = arith.constant 0 : index
    %c0_16 = arith.constant 0 : index
    %19 = vector.load %arg7[%c0_15, %c0_16] : memref<1x128xf32, #tpu.memory_space<vmem>>, vector<1x128xf32>
    %20 = vector.broadcast %19 : vector<1x128xf32> to vector<8x128xf32>
    %21 = arith.addf %18, %20 : vector<8x128xf32>
    %cst_17 = arith.constant 0.000000e+00 : f32
    %22 = vector.broadcast %cst_17 : f32 to vector<8x128xf32>
    %23 = arith.maximumf %21, %22 : vector<8x128xf32>
    %24 = arith.truncf %23 : vector<8x128xf32> to vector<8x128xbf16>
    %c0_18 = arith.constant 0 : index
    %c0_19 = arith.constant 0 : index
    %25 = vector.load %arg8[%c0_18, %c0_19] : memref<128x128xbf16, #tpu.memory_space<vmem>>, vector<128x128xbf16>
    %cst_20 = arith.constant dense<0.000000e+00> : vector<8x128xf32>
    %26 = tpu.matmul %24, %25, %cst_20 {dimension_numbers = #tpu.dot_dimension_numbers<[1], [0], [0], [1], [0, 0, 1, 1], [], []>} : vector<8x128xbf16>, vector<128x128xbf16>, vector<8x128xf32> -> vector<8x128xf32>
    %c0_21 = arith.constant 0 : index
    %c0_22 = arith.constant 0 : index
    %27 = vector.load %arg9[%c0_21, %c0_22] : memref<1x128xf32, #tpu.memory_space<vmem>>, vector<1x128xf32>
    %28 = vector.broadcast %27 : vector<1x128xf32> to vector<8x128xf32>
    %29 = arith.addf %26, %28 : vector<8x128xf32>
    %30 = arith.negf %29 : vector<8x128xf32>
    %31 = math.exp %30 : vector<8x128xf32>
    %cst_23 = arith.constant 1.000000e+00 : f32
    %32 = vector.broadcast %cst_23 : f32 to vector<8x128xf32>
    %33 = arith.addf %32, %31 : vector<8x128xf32>
    %34 = arith.divf %32, %33 : vector<8x128xf32>
    %c0_24 = arith.constant 0 : index
    %c0_25 = arith.constant 0 : index
    %35 = vector.load %arg10[%c0_24, %c0_25] : memref<8x128xf32, #tpu.memory_space<vmem>>, vector<8x128xf32>
    tpu.vector_store %arg10[%c0_24, %c0_25], %34 {strides = array<i32>} : memref<8x128xf32, #tpu.memory_space<vmem>>, vector<8x128xf32>,
    return
  }
  func.func @transform_0(%arg0: i32) -> (i32, i32) {
    %c0_i32 = arith.constant 0 : i32
    %c0_i32_0 = arith.constant 0 : i32
    return %arg0, %c0_i32 : i32, i32
  }
  func.func @transform_1(%arg0: i32) -> (i32, i32) {
    %c0_i32 = arith.constant 0 : i32
    %c0_i32_0 = arith.constant 0 : i32
    %c0_i32_1 = arith.constant 0 : i32
    return %c0_i32, %c0_i32_0 : i32, i32
  }
  func.func @transform_2(%arg0: i32) -> (i32, i32) {
    %c0_i32 = arith.constant 0 : i32
    %c0_i32_0 = arith.constant 0 : i32
    %c0_i32_1 = arith.constant 0 : i32
    return %c0_i32, %c0_i32_0 : i32, i32
  }
  func.func @transform_3(%arg0: i32) -> (i32, i32) {
    %c0_i32 = arith.constant 0 : i32
    %c0_i32_0 = arith.constant 0 : i32
    %c0_i32_1 = arith.constant 0 : i32
    return %c0_i32, %c0_i32_0 : i32, i32
  }
  func.func @transform_4(%arg0: i32) -> (i32, i32) {
    %c0_i32 = arith.constant 0 : i32
    %c0_i32_0 = arith.constant 0 : i32
    %c0_i32_1 = arith.constant 0 : i32
    return %c0_i32, %c0_i32_0 : i32, i32
  }
  func.func @transform_5(%arg0: i32) -> (i32, i32) {
    %c0_i32 = arith.constant 0 : i32
    %c0_i32_0 = arith.constant 0 : i32
    %c0_i32_1 = arith.constant 0 : i32
    return %c0_i32, %c0_i32_0 : i32, i32
  }
  func.func @transform_6(%arg0: i32) -> (i32, i32) {
    %c0_i32 = arith.constant 0 : i32
    %c0_i32_0 = arith.constant 0 : i32
    %c0_i32_1 = arith.constant 0 : i32
    return %c0_i32, %c0_i32_0 : i32, i32
  }
  func.func @transform_7(%arg0: i32) -> (i32, i32) {
    %c0_i32 = arith.constant 0 : i32
    %c0_i32_0 = arith.constant 0 : i32
    %c0_i32_1 = arith.constant 0 : i32
    return %c0_i32, %c0_i32_0 : i32, i32
  }
  func.func @transform_8(%arg0: i32) -> (i32, i32) {
    %c0_i32 = arith.constant 0 : i32
    %c0_i32_0 = arith.constant 0 : i32
    %c0_i32_1 = arith.constant 0 : i32
    return %c0_i32, %c0_i32_0 : i32, i32
  }
  func.func @transform_9(%arg0: i32) -> (i32, i32) {
    %c0_i32 = arith.constant 0 : i32
    %c0_i32_0 = arith.constant 0 : i32
    return %arg0, %c0_i32 : i32, i32
  }
}

</mosaic_0001>

<llo_original>
// kernel: target_model_forward.1
$region0: #{target_model_forward.1}
  #allocation0 [shape = 'u32[]', space=smem, size = 0x4, offset = 0x4, fixed_abs, tag = 'smem constant byte address 0x4 - core index']
  #allocation1 [shape = 'u32[72,128]{1,0:T(1,128)}', space=vmem, size = 0x9000, scoped, tag = 'internal scratch']
  %s0 = inlined_call_operand.vmem [shape: bf16[8,128], index: 0, kind: input, shape index: {}]
  %s1 = inlined_call_operand.vmem [shape: bf16[128,128], index: 1, kind: input, shape index: {}]
  %s2 = inlined_call_operand.vmem [shape: f32[1,128], index: 2, kind: input, shape index: {}]
  %s3 = inlined_call_operand.vmem [shape: bf16[128,128], index: 3, kind: input, shape index: {}]
  %s4 = inlined_call_operand.vmem [shape: f32[1,128], index: 4, kind: input, shape index: {}]
  %s5 = inlined_call_operand.vmem [shape: bf16[128,128], index: 5, kind: input, shape index: {}]
  %s6 = inlined_call_operand.vmem [shape: f32[1,128], index: 6, kind: input, shape index: {}]
  %s7 = inlined_call_operand.vmem [shape: bf16[128,128], index: 7, kind: input, shape index: {}]
  %s8 = inlined_call_operand.vmem [shape: f32[1,128], index: 8, kind: input, shape index: {}]
  %s9 = inlined_call_operand.vmem [shape: f32[8,128], index: 9, kind: output, shape index: {}]
  %s10 = sld [smem:[#allocation0]]
  $region46: #{target_model_forward.1} parent=0
    _
  %s12 = ssub.s32 1, %s10
  %s13 = scalar_select 0, %s12, %s10
  // Predicated region
  $region2: #{target_model_forward.1} parent=0 // pred_check
    _
  $region3: #{target_model_forward.1} parent=0 // pred_check_branch
    %15 = sbr.rel (0) target = $region5
  $region4: #{target_model_forward.1} parent=0 // pred_region
    _
  $region5: #{target_model_forward.1} parent=0 // pred_fallthru
    _
  // Predicated region
  $region6: #{target_model_forward.1} parent=0 // pred_check
    _
  $region7: #{target_model_forward.1} parent=0 // pred_check_branch
    %17 = sbr.rel (0) target = $region9
  $region8: #{target_model_forward.1} parent=0 // pred_region
    _
  $region9: #{target_model_forward.1} parent=0 // pred_fallthru
    _
  // Predicated region
  $region10: #{target_model_forward.1} parent=0 // pred_check
    _
  $region11: #{target_model_forward.1} parent=0 // pred_check_branch
    %19 = sbr.rel (0) target = $region13
  $region12: #{target_model_forward.1} parent=0 // pred_region
    _
  $region13: #{target_model_forward.1} parent=0 // pred_fallthru
    _
  // Predicated region
  $region14: #{target_model_forward.1} parent=0 // pred_check
    _
  $region15: #{target_model_forward.1} parent=0 // pred_check_branch
    %21 = sbr.rel (0) target = $region17
  $region16: #{target_model_forward.1} parent=0 // pred_region
    _
  $region17: #{target_model_forward.1} parent=0 // pred_fallthru
    _
  // Predicated region
  $region18: #{target_model_forward.1} parent=0 // pred_check
    _
  $region19: #{target_model_forward.1} parent=0 // pred_check_branch
    %23 = sbr.rel (0) target = $region21
  $region20: #{target_model_forward.1} parent=0 // pred_region
    _
  $region21: #{target_model_forward.1} parent=0 // pred_fallthru
    _
  // Predicated region
  $region22: #{target_model_forward.1} parent=0 // pred_check
    _
  $region23: #{target_model_forward.1} parent=0 // pred_check_branch
    %25 = sbr.rel (0) target = $region25
  $region24: #{target_model_forward.1} parent=0 // pred_region
    _
  $region25: #{target_model_forward.1} parent=0 // pred_fallthru
    _
  // Predicated region
  $region26: #{target_model_forward.1} parent=0 // pred_check
    _
  $region27: #{target_model_forward.1} parent=0 // pred_check_branch
    %27 = sbr.rel (0) target = $region29
  $region28: #{target_model_forward.1} parent=0 // pred_region
    _
  $region29: #{target_model_forward.1} parent=0 // pred_fallthru
    _
  // Predicated region
  $region30: #{target_model_forward.1} parent=0 // pred_check
    _
  $region31: #{target_model_forward.1} parent=0 // pred_check_branch
    %29 = sbr.rel (0) target = $region33
  $region32: #{target_model_forward.1} parent=0 // pred_region
    _
  $region33: #{target_model_forward.1} parent=0 // pred_fallthru
    _
  // Predicated region
  $region34: #{target_model_forward.1} parent=0 // pred_check
    _
  $region35: #{target_model_forward.1} parent=0 // pred_check_branch
    %31 = sbr.rel (0) target = $region37
  $region36: #{target_model_forward.1} parent=0 // pred_region
    _
  $region37: #{target_model_forward.1} parent=0 // pred_fallthru
    _
  %v32 = vld [vmem:[%s0] sm:$0xf]
  %v33 = vld [vmem:[%s1] sm:$0xf]
  %v34 = vld [vmem:[%s1 + $0x4] sm:$0xf]
  %v35 = vld [vmem:[%s1 + $0x8] sm:$0xf]
  %v36 = vld [vmem:[%s1 + $0xc] sm:$0xf]
  %v37 = vld [vmem:[%s1 + $0x10] sm:$0xf]
  %v38 = vld [vmem:[%s1 + $0x14] sm:$0xf]
  %v39 = vld [vmem:[%s1 + $0x18] sm:$0xf]
  %v40 = vld [vmem:[%s1 + $0x1c] sm:$0xf]
  %v41 = vld [vmem:[%s1 + $0x20] sm:$0xf]
  %v42 = vld [vmem:[%s1 + $0x24] sm:$0xf]
  %v43 = vld [vmem:[%s1 + $0x28] sm:$0xf]
  %v44 = vld [vmem:[%s1 + $0x2c] sm:$0xf]
  %v45 = vld [vmem:[%s1 + $0x30] sm:$0xf]
  %v46 = vld [vmem:[%s1 + $0x34] sm:$0xf]
  %v47 = vld [vmem:[%s1 + $0x38] sm:$0xf]
  %v48 = vld [vmem:[%s1 + $0x3c] sm:$0xf]
  %v49 = vld [vmem:[%s2] sm:$0x1]
  %v51 = vperm.slane %v49, 0
  %v69 = vunpack.c.l.b16 %v33
  %v70 = vunpack.c.l.b16 %v34
  %v71 = vunpack.c.l.b16 %v35
  %v72 = vunpack.c.l.b16 %v36
  %v73 = vunpack.c.l.b16 %v37
  %v74 = vunpack.c.l.b16 %v38
  %v75 = vunpack.c.l.b16 %v39
  %v76 = vunpack.c.l.b16 %v40
  %v77 = vunpack.c.l.b16 %v41
  %v78 = vunpack.c.l.b16 %v42
  %v79 = vunpack.c.l.b16 %v43
  %v80 = vunpack.c.l.b16 %v44
  %v81 = vunpack.c.l.b16 %v45
  %v82 = vunpack.c.l.b16 %v46
  %v83 = vunpack.c.l.b16 %v47
  %v84 = vunpack.c.l.b16 %v48
  %v85 = vpack.c.b16 %v70, %v69
  %v86 = vpack.c.b16 %v72, %v71
  %v87 = vpack.c.b16 %v74, %v73
  %v88 = vpack.c.b16 %v76, %v75
  %v89 = vpack.c.b16 %v78, %v77
  %v90 = vpack.c.b16 %v80, %v79
  %v91 = vpack.c.b16 %v82, %v81
  %v92 = vpack.c.b16 %v84, %v83
  %101 = vmatpush.bf16.msra.mxu0 %v92
  %102 = vmatpush.bf16.msra.mxu0 %v91
  %103 = vmatpush.bf16.msra.mxu0 %v90
  %104 = vmatpush.bf16.msra.mxu0 %v89
  %105 = vmatpush.bf16.msra.mxu0 %v88
  %106 = vmatpush.bf16.msra.mxu0 %v87
  %107 = vmatpush.bf16.msra.mxu0 %v86
  %108 = vmatpush.bf16.msra.mxu0 %v85
  %109 = vmatmul.bf16.gmra.mxu0 %v32
  %v110 = vpop.f32.mrf.mxu0
  %v111 = vadd.f32 %v51, %v110
  %v112 = vpop.f32.mrf.mxu0
  %113 = vdwg.mxu0
  %v114 = vmax.f32 %v111, 0.0
  %v115 = vpack.c.bf16 %v114, %v114
  %v116 = vld [vmem:[%s3] sm:$0xf]
  %v117 = vld [vmem:[%s3 + $0x4] sm:$0xf]
  %v118 = vld [vmem:[%s3 + $0x8] sm:$0xf]
  %v119 = vld [vmem:[%s3 + $0xc] sm:$0xf]
  %v120 = vld [vmem:[%s3 + $0x10] sm:$0xf]
  %v121 = vld [vmem:[%s3 + $0x14] sm:$0xf]
  %v122 = vld [vmem:[%s3 + $0x18] sm:$0xf]
  %v123 = vld [vmem:[%s3 + $0x1c] sm:$0xf]
  %v124 = vld [vmem:[%s3 + $0x20] sm:$0xf]
  %v125 = vld [vmem:[%s3 + $0x24] sm:$0xf]
  %v126 = vld [vmem:[%s3 + $0x28] sm:$0xf]
  %v127 = vld [vmem:[%s3 + $0x2c] sm:$0xf]
  %v128 = vld [vmem:[%s3 + $0x30] sm:$0xf]
  %v129 = vld [vmem:[%s3 + $0x34] sm:$0xf]
  %v130 = vld [vmem:[%s3 + $0x38] sm:$0xf]
  %v131 = vld [vmem:[%s3 + $0x3c] sm:$0xf]
  %v132 = vld [vmem:[%s4] sm:$0x1]
  %v134 = vperm.slane %v132, 0
  %v152 = vunpack.c.l.b16 %v116
  %v153 = vunpack.c.l.b16 %v117
  %v154 = vunpack.c.l.b16 %v118
  %v155 = vunpack.c.l.b16 %v119
  %v156 = vunpack.c.l.b16 %v120
  %v157 = vunpack.c.l.b16 %v121
  %v158 = vunpack.c.l.b16 %v122
  %v159 = vunpack.c.l.b16 %v123
  %v160 = vunpack.c.l.b16 %v124
  %v161 = vunpack.c.l.b16 %v125
  %v162 = vunpack.c.l.b16 %v126
  %v163 = vunpack.c.l.b16 %v127
  %v164 = vunpack.c.l.b16 %v128
  %v165 = vunpack.c.l.b16 %v129
  %v166 = vunpack.c.l.b16 %v130
  %v167 = vunpack.c.l.b16 %v131
  %v168 = vpack.c.b16 %v153, %v152
  %v169 = vpack.c.b16 %v155, %v154
  %v170 = vpack.c.b16 %v157, %v156
  %v171 = vpack.c.b16 %v159, %v158
  %v172 = vpack.c.b16 %v161, %v160
  %v173 = vpack.c.b16 %v163, %v162
  %v174 = vpack.c.b16 %v165, %v164
  %v175 = vpack.c.b16 %v167, %v166
  %184 = vmatpush.bf16.msra.mxu0 %v175
  %185 = vmatpush.bf16.msra.mxu0 %v174
  %186 = vmatpush.bf16.msra.mxu0 %v173
  %187 = vmatpush.bf16.msra.mxu0 %v172
  %188 = vmatpush.bf16.msra.mxu0 %v171
  %189 = vmatpush.bf16.msra.mxu0 %v170
  %190 = vmatpush.bf16.msra.mxu0 %v169
  %191 = vmatpush.bf16.msra.mxu0 %v168
  %192 = vmatmul.bf16.gmra.mxu0 %v115
  %v193 = vpop.f32.mrf.mxu0
  %v194 = vadd.f32 %v134, %v193
  %v195 = vpop.f32.mrf.mxu0
  %196 = vdwg.mxu0
  %v197 = vmax.f32 %v194, 0.0
  %v198 = vpack.c.bf16 %v197, %v197
  %v199 = vld [vmem:[%s5] sm:$0xf]
  %v200 = vld [vmem:[%s5 + $0x4] sm:$0xf]
  %v201 = vld [vmem:[%s5 + $0x8] sm:$0xf]
  %v202 = vld [vmem:[%s5 + $0xc] sm:$0xf]
  %v203 = vld [vmem:[%s5 + $0x10] sm:$0xf]
  %v204 = vld [vmem:[%s5 + $0x14] sm:$0xf]
  %v205 = vld [vmem:[%s5 + $0x18] sm:$0xf]
  %v206 = vld [vmem:[%s5 + $0x1c] sm:$0xf]
  %v207 = vld [vmem:[%s5 + $0x20] sm:$0xf]
  %v208 = vld [vmem:[%s5 + $0x24] sm:$0xf]
  %v209 = vld [vmem:[%s5 + $0x28] sm:$0xf]
  %v210 = vld [vmem:[%s5 + $0x2c] sm:$0xf]
  %v211 = vld [vmem:[%s5 + $0x30] sm:$0xf]
  %v212 = vld [vmem:[%s5 + $0x34] sm:$0xf]
  %v213 = vld [vmem:[%s5 + $0x38] sm:$0xf]
  %v214 = vld [vmem:[%s5 + $0x3c] sm:$0xf]
  %v215 = vld [vmem:[%s6] sm:$0x1]
  %v217 = vperm.slane %v215, 0
  %v235 = vunpack.c.l.b16 %v199
  %v236 = vunpack.c.l.b16 %v200
  %v237 = vunpack.c.l.b16 %v201
  %v238 = vunpack.c.l.b16 %v202
  %v239 = vunpack.c.l.b16 %v203
  %v240 = vunpack.c.l.b16 %v204
  %v241 = vunpack.c.l.b16 %v205
  %v242 = vunpack.c.l.b16 %v206
  %v243 = vunpack.c.l.b16 %v207
  %v244 = vunpack.c.l.b16 %v208
  %v245 = vunpack.c.l.b16 %v209
  %v246 = vunpack.c.l.b16 %v210
  %v247 = vunpack.c.l.b16 %v211
  %v248 = vunpack.c.l.b16 %v212
  %v249 = vunpack.c.l.b16 %v213
  %v250 = vunpack.c.l.b16 %v214
  %v251 = vpack.c.b16 %v236, %v235
  %v252 = vpack.c.b16 %v238, %v237
  %v253 = vpack.c.b16 %v240, %v239
  %v254 = vpack.c.b16 %v242, %v241
  %v255 = vpack.c.b16 %v244, %v243
  %v256 = vpack.c.b16 %v246, %v245
  %v257 = vpack.c.b16 %v248, %v247
  %v258 = vpack.c.b16 %v250, %v249
  %267 = vmatpush.bf16.msra.mxu0 %v258
  %268 = vmatpush.bf16.msra.mxu0 %v257
  %269 = vmatpush.bf16.msra.mxu0 %v256
  %270 = vmatpush.bf16.msra.mxu0 %v255
  %271 = vmatpush.bf16.msra.mxu0 %v254
  %272 = vmatpush.bf16.msra.mxu0 %v253
  %273 = vmatpush.bf16.msra.mxu0 %v252
  %274 = vmatpush.bf16.msra.mxu0 %v251
  %275 = vmatmul.bf16.gmra.mxu0 %v198
  %v276 = vpop.f32.mrf.mxu0
  %v277 = vadd.f32 %v217, %v276
  %v278 = vpop.f32.mrf.mxu0
  %279 = vdwg.mxu0
  %v280 = vmax.f32 %v277, 0.0
  %v281 = vpack.c.bf16 %v280, %v280
  %v282 = vld [vmem:[%s7] sm:$0xf]
  %v283 = vld [vmem:[%s7 + $0x4] sm:$0xf]
  %v284 = vld [vmem:[%s7 + $0x8] sm:$0xf]
  %v285 = vld [vmem:[%s7 + $0xc] sm:$0xf]
  %v286 = vld [vmem:[%s7 + $0x10] sm:$0xf]
  %v287 = vld [vmem:[%s7 + $0x14] sm:$0xf]
  %v288 = vld [vmem:[%s7 + $0x18] sm:$0xf]
  %v289 = vld [vmem:[%s7 + $0x1c] sm:$0xf]
  %v290 = vld [vmem:[%s7 + $0x20] sm:$0xf]
  %v291 = vld [vmem:[%s7 + $0x24] sm:$0xf]
  %v292 = vld [vmem:[%s7 + $0x28] sm:$0xf]
  %v293 = vld [vmem:[%s7 + $0x2c] sm:$0xf]
  %v294 = vld [vmem:[%s7 + $0x30] sm:$0xf]
  %v295 = vld [vmem:[%s7 + $0x34] sm:$0xf]
  %v296 = vld [vmem:[%s7 + $0x38] sm:$0xf]
  %v297 = vld [vmem:[%s7 + $0x3c] sm:$0xf]
  %v298 = vld [vmem:[%s8] sm:$0x1]
  %v300 = vperm.slane %v298, 0
  %v318 = vunpack.c.l.b16 %v282
  %v319 = vunpack.c.l.b16 %v283
  %v320 = vunpack.c.l.b16 %v284
  %v321 = vunpack.c.l.b16 %v285
  %v322 = vunpack.c.l.b16 %v286
  %v323 = vunpack.c.l.b16 %v287
  %v324 = vunpack.c.l.b16 %v288
  %v325 = vunpack.c.l.b16 %v289
  %v326 = vunpack.c.l.b16 %v290
  %v327 = vunpack.c.l.b16 %v291
  %v328 = vunpack.c.l.b16 %v292
  %v329 = vunpack.c.l.b16 %v293
  %v330 = vunpack.c.l.b16 %v294
  %v331 = vunpack.c.l.b16 %v295
  %v332 = vunpack.c.l.b16 %v296
  %v333 = vunpack.c.l.b16 %v297
  %v334 = vpack.c.b16 %v319, %v318
  %v335 = vpack.c.b16 %v321, %v320
  %v336 = vpack.c.b16 %v323, %v322
  %v337 = vpack.c.b16 %v325, %v324
  %v338 = vpack.c.b16 %v327, %v326
  %v339 = vpack.c.b16 %v329, %v328
  %v340 = vpack.c.b16 %v331, %v330
  %v341 = vpack.c.b16 %v333, %v332
  %350 = vmatpush.bf16.msra.mxu0 %v341
  %351 = vmatpush.bf16.msra.mxu0 %v340
  %352 = vmatpush.bf16.msra.mxu0 %v339
  %353 = vmatpush.bf16.msra.mxu0 %v338
  %354 = vmatpush.bf16.msra.mxu0 %v337
  %355 = vmatpush.bf16.msra.mxu0 %v336
  %356 = vmatpush.bf16.msra.mxu0 %v335
  %357 = vmatpush.bf16.msra.mxu0 %v334
  %358 = vmatmul.bf16.gmra.mxu0 %v281
  %v359 = vpop.f32.mrf.mxu0
  %v360 = vadd.f32 %v300, %v359
  %v361 = vpop.f32.mrf.mxu0
  %362 = vdwg.mxu0
  %v363 = vxor.u32 %v360, 2147483648
  %v364 = vmul.f32 %v363, 1.442695
  %v365 = vpow.pop %v364
  %v366 = vadd.f32 %v365, 1.0
  %v367 = vrcp.pop %v366
  %v368 = vmul.f32 %v366, %v367
  %v369 = vsub.f32 1.0, %v368
  %v370 = vmul.f32 %v367, %v369
  %v371 = vadd.f32 %v367, %v370
  %vm372 = vweird.f32 %v366
  %vm373 = vweird.f32 %v367
  %vm374 = vmor %vm372, %vm373
  %v375 = vsel %vm374, %v367, %v371
  %v376 = vand.u32 2147483647, %v366
  %vm377 = vcmp.eq.f32.partialorder %v376, 8.507059e+37
  %v378 = vand.u32 %v366, 2147483648
  %v379 = vor.u32 1.1754944e-38, %v378
  %v380 = vsel %vm377, %v379, %v375
  %v381 = vmul.f32 1.0, %v380
  %382 = vst [vmem:[%s9] sm:$0xff] %v381
  // Predicated region
  $region38: #{target_model_forward.1} parent=0 // pred_check
    _
  $region39: #{target_model_forward.1} parent=0 // pred_check_branch
    %384 = sbr.rel (0) target = $region41
  $region40: #{target_model_forward.1} parent=0 // pred_region
    _
  $region41: #{target_model_forward.1} parent=0 // pred_fallthru
    _
  // Predicated region
  $region42: #{target_model_forward.1} parent=0 // pred_check
    _
  $region43: #{target_model_forward.1} parent=0 // pred_check_branch
    %386 = sbr.rel (0) target = $region45
  $region44: #{target_model_forward.1} parent=0 // pred_region
    _
  $region45: #{target_model_forward.1} parent=0 // pred_fallthru
    _

</llo_original>
